<compile_context>
chip_gen: v6e
topology: v6e:2x2x1
jax: 0.10.0
libtpu: 0.0.40
codegen_flags: <defaults>
</compile_context>

<pallas_src>
import functools

import jax
import jax.numpy as jnp
from jax.experimental import pallas as pl
from jax.experimental.pallas import tpu as pltpu


_MIB = 1024 * 1024


@functools.lru_cache(maxsize=None)
def _tpu_mem_budget():
    """Returns (vmem_limit_bytes, target_tile_bytes) gated on device VMEM."""
    try:
        info = pltpu.get_tpu_info()
        cap = int(getattr(info, "vmem_capacity_bytes", 64 * _MIB))
    except Exception:  # no TPU info available at trace time -> be conservative
        cap = 64 * _MIB
    if cap >= 128 * _MIB:            # v5e / v6e: 128 MiB VMEM
        return 64 * _MIB, 8 * _MIB
    return 32 * _MIB, 4 * _MIB       # v7x: 64 MiB VMEM per TensorCore


def _copy_kernel(x_ref, o_ref):
    # Pass-through scaffolding: copy the current (row_tile, lanes) tile.
    # TODO(synk): real DeconvSEN compute (deconv + squeeze-excite) goes here
    # once the reference forward is non-empty.
    o_ref[...] = x_ref[...]


@jax.jit
def pallas_passthrough(xs: jax.Array) -> jax.Array:
    """Streams xs through a tiled, lane-dense Pallas copy kernel."""
    orig_shape = xs.shape
    total = xs.size
    itemsize = xs.dtype.itemsize
    # Sublane packing multiple: f32 -> 8, bf16 -> 16, int8/fp8 -> 32.
    sub = max(8, 32 // itemsize)

    vmem_limit, tile_bytes = _tpu_mem_budget()

    flat = xs.reshape(-1)

    # Lane-dense layout taken straight from the flat size: no pad / no slice
    # on the common path (total a multiple of 128).
    lanes = None
    for cand in (512, 256, 128):
        if total % cand == 0:
            lanes = cand
            break

    pad = 0
    if lanes is None:
        # Rare ragged case (size not a multiple of 128): minimal tail pad.
        # TODO(synk): fold the <128-element tail into the last block with a
        # masked pltpu.store once real compute lands, removing this copy.
        lanes = 128
        pad = (-total) % lanes
        flat = jnp.pad(flat, (0, pad))

    rows = (total + pad) // lanes
    x2d = flat.reshape(rows, lanes)

    # Row tile targeting ~tile_bytes per buffer, a multiple of the sublane
    # packing.  Non-divisible row counts rely on Pallas partial-block masking
    # (no dead-row padding of the array itself).
    target_rows = max(sub, (tile_bytes // (lanes * itemsize)) // sub * sub)
    if rows > target_rows:
        row_tile = target_rows
    elif rows >= 2 * sub:
        # Small but splittable: use >=2 tiles so v7x's two TensorCores both
        # get work under dimension_semantics=("parallel",).
        row_tile = pl.cdiv(pl.cdiv(rows, 2), sub) * sub
    else:
        row_tile = rows              # single full-extent block (always legal)
    grid = pl.cdiv(rows, row_tile)

    y2d = pl.pallas_call(
        _copy_kernel,
        out_shape=jax.ShapeDtypeStruct((rows, lanes), x2d.dtype),
        grid=(grid,),
        in_specs=[pl.BlockSpec((row_tile, lanes), lambda i: (i, 0))],
        out_specs=pl.BlockSpec((row_tile, lanes), lambda i: (i, 0)),
        compiler_params=pltpu.CompilerParams(
            dimension_semantics=("parallel",),   # independent row tiles
            vmem_limit_bytes=vmem_limit,
        ),
    )(x2d)

    out = y2d.reshape(-1)
    if pad:
        out = out[:total]
    return out.reshape(orig_shape)


def deconv_sen_forward(xs):
    """Exact semantic match of DeconvSEN.forward: body is `pass` -> None."""
    return None


if __name__ == "__main__":
    key = jax.random.PRNGKey(0)
    # Small NCHW input consistent with a conv-style module.
    xs = jax.random.normal(key, (2, 4, 16, 16), dtype=jnp.float32)

    # Exercise the Pallas kernel path and block on its result.
    y = pallas_passthrough(xs)
    jax.block_until_ready(y)
    assert y.shape == xs.shape and y.dtype == xs.dtype
    assert bool(jnp.allclose(y, xs))

    # Reference-faithful forward: returns None (empty body in the source).
    ref_out = deconv_sen_forward(xs)
    assert ref_out is None

    print("KERNEL_OK")
</pallas_src>

<mosaic_0001>
module attributes {stable_mosaic.version = 11 : i64} {
  func.func @_copy_kernel(%arg0: i32, %arg1: memref<4x512xf32, #tpu.memory_space<vmem>>, %arg2: memref<4x512xf32, #tpu.memory_space<vmem>>) attributes {dimension_semantics = [#tpu.dimension_semantics<parallel>], iteration_bounds = array<i64: 1>, scalar_prefetch = 0 : i64, scratch_operands = 0 : i64, tpu.core_type = #tpu.core_type<tc>, window_params = [{transform_indices = @transform_0, window_bounds = array<i64: 4, 512>}, {transform_indices = @transform_1, window_bounds = array<i64: 4, 512>}]} {
    %c0 = arith.constant 0 : index
    %c0_0 = arith.constant 0 : index
    %0 = vector.load %arg1[%c0, %c0_0] : memref<4x512xf32, #tpu.memory_space<vmem>>, vector<4x512xf32>
    %c0_1 = arith.constant 0 : index
    %c0_2 = arith.constant 0 : index
    %1 = vector.load %arg2[%c0_1, %c0_2] : memref<4x512xf32, #tpu.memory_space<vmem>>, vector<4x512xf32>
    tpu.vector_store %arg2[%c0_1, %c0_2], %0 {strides = array<i32>} : memref<4x512xf32, #tpu.memory_space<vmem>>, vector<4x512xf32>,
    return
  }
  func.func @transform_0(%arg0: i32) -> (i32, i32) {
    %c0_i32 = arith.constant 0 : i32
    %c0_i32_0 = arith.constant 0 : i32
    return %arg0, %c0_i32 : i32, i32
  }
  func.func @transform_1(%arg0: i32) -> (i32, i32) {
    %c0_i32 = arith.constant 0 : i32
    %c0_i32_0 = arith.constant 0 : i32
    return %arg0, %c0_i32 : i32, i32
  }
}

</mosaic_0001>

<llo_original>
// kernel: pallas_passthrough.1
$region0: #{pallas_passthrough.1}
  #allocation0 [shape = 'u32[]', space=smem, size = 0x4, offset = 0x4, fixed_abs, tag = 'smem constant byte address 0x4 - core index']
  #allocation1 [shape = 'u32[144,128]{1,0:T(1,128)}', space=vmem, size = 0x12000, scoped, tag = 'internal scratch']
  %s0 = inlined_call_operand.vmem [shape: f32[4,512], index: 0, kind: input, shape index: {}]
  %s1 = inlined_call_operand.vmem [shape: f32[4,512], index: 1, kind: output, shape index: {}]
  %s2 = sld [smem:[#allocation0]]
  $region14: #{pallas_passthrough.1} parent=0
    _
  %s4 = ssub.s32 1, %s2
  %s5 = scalar_select 0, %s4, %s2
  // Predicated region
  $region2: #{pallas_passthrough.1} parent=0 // pred_check
    _
  $region3: #{pallas_passthrough.1} parent=0 // pred_check_branch
    %7 = sbr.rel (0) target = $region5
  $region4: #{pallas_passthrough.1} parent=0 // pred_region
    _
  $region5: #{pallas_passthrough.1} parent=0 // pred_fallthru
    _
  %v8 = vld [vmem:[%s0] sm:$0xff]
  %v9 = vld [vmem:[%s0 + $0x8] sm:$0xff]
  %10 = vst [vmem:[%s1] sm:$0xff] %v8
  %11 = vst [vmem:[%s1 + $0x8] sm:$0xff] %v9
  // Predicated region
  $region6: #{pallas_passthrough.1} parent=0 // pred_check
    _
  $region7: #{pallas_passthrough.1} parent=0 // pred_check_branch
    %13 = sbr.rel (0) target = $region9
  $region8: #{pallas_passthrough.1} parent=0 // pred_region
    _
  $region9: #{pallas_passthrough.1} parent=0 // pred_fallthru
    _
  // Predicated region
  $region10: #{pallas_passthrough.1} parent=0 // pred_check
    _
  $region11: #{pallas_passthrough.1} parent=0 // pred_check_branch
    %15 = sbr.rel (0) target = $region13
  $region12: #{pallas_passthrough.1} parent=0 // pred_region
    _
  $region13: #{pallas_passthrough.1} parent=0 // pred_fallthru
    _

</llo_original>
